<compile_context>
chip_gen: v5e
topology: v5e:2x2
jax: 0.10.0
libtpu: 0.0.40
codegen_flags: <defaults>
</compile_context>

<pallas_src>
import functools
import math

import jax
import jax.numpy as jnp
from jax.experimental import pallas as pl
from jax.experimental.pallas import tpu as pltpu


def make_positional_encoding(d_model: int, max_len: int = 5000,
                             dtype=jnp.float32) -> jnp.ndarray:
    """Deterministic buffer identical to the PyTorch __init__ (even d_model)."""
    assert d_model % 2 == 0, "PositionalEncoding requires even d_model (as in torch)"
    position = jnp.arange(0, max_len, dtype=jnp.float32)[:, None]            # (max_len, 1)
    div_term = jnp.exp(
        jnp.arange(0, d_model, 2, dtype=jnp.float32) * (-math.log(10000.0) / d_model)
    )                                                                         # (d_model/2,)
    angles = position * div_term                                              # (max_len, d_model/2)
    pe = jnp.zeros((max_len, d_model), dtype=jnp.float32)
    pe = pe.at[:, 0::2].set(jnp.sin(angles))
    pe = pe.at[:, 1::2].set(jnp.cos(angles))
    # pe.unsqueeze(0).transpose(0, 1) -> (max_len, 1, d_model), like the torch buffer.
    return pe[:, None, :].astype(dtype)


def _pe_add_kernel(x_ref, pe_ref, o_ref, *, batch: int):
    # x_ref : (ts, batch * d_model)   lane-dense slab of x
    # pe_ref: (ts, d_model)           one pe row-block (no padded singleton dim)
    pe = pe_ref[...]
    if batch > 1:
        # Lane-tile pe across the flattened batch dim so the add and the store
        # happen on a single lane-dense value (one wide vst, no masked stores).
        pe = jnp.concatenate([pe] * batch, axis=-1)       # (ts, batch * d_model)
    o_ref[...] = (x_ref[...] + pe).astype(o_ref.dtype)


def positional_encoding_forward(x: jnp.ndarray, pe: jnp.ndarray,
                                *, donate_x: bool = False) -> jnp.ndarray:
    """x: (seq_len, batch, d_model); pe: (max_len, 1, d_model) or (max_len, d_model)."""
    seq_len, batch, d_model = x.shape
    if pe.ndim == 3:
        assert pe.shape[1] == 1
        pe = pe.reshape(pe.shape[0], pe.shape[2])          # free squeeze, no copy
    assert pe.shape[0] >= seq_len and pe.shape[1] == d_model

    # Flatten batch into the lane dim (free for seq-first contiguous layout).
    cols = batch * d_model
    x2 = x.reshape(seq_len, cols)

    itemsize = jnp.dtype(x.dtype).itemsize
    row_bytes_x = cols * itemsize                           # one seq row of x
    row_bytes_all = (2 * cols + d_model) * itemsize         # x in + out + pe per row

    # Chip-derived VMEM budget for the double-buffered tiles.
    try:
        info = pltpu.get_tpu_info()
        vmem_cap = int(getattr(info, "vmem_capacity_bytes", 64 << 20))
    except Exception:                                       # pragma: no cover
        vmem_cap = 64 << 20
    budget = int(0.45 * vmem_cap)

    # Largest seq tile that fits the double-buffered budget (no arbitrary row cap).
    ts = max(1, budget // (2 * row_bytes_all))

    # Keep >= 2 grid steps (v7x 2-TC megacore) when halving still leaves
    # MB-scale (~>=4 MiB of x) slabs per step.
    target_rows = pl.cdiv(4 << 20, row_bytes_x)
    if seq_len >= 2 * max(8, target_rows):
        ts = min(ts, pl.cdiv(seq_len, 2))

    ts = min(ts, seq_len)
    ts = ((ts + 7) // 8) * 8                                # sublane multiple (>= 8);
                                                            # edge blocks are masked by Pallas
    grid = (pl.cdiv(seq_len, ts),)

    # Scoped VMEM limit: enough for the tiles, <= ~70% of physical capacity
    # (~45 MiB on v7x's 64 MiB parts, ~90 MiB on 128 MiB parts).
    vmem_needed = 2 * ts * row_bytes_all
    vmem_limit = int(min(max(vmem_needed + (2 << 20), 32 << 20),
                         int(0.7 * vmem_cap)))

    total_bytes = (2 * seq_len * cols + seq_len * d_model) * itemsize
    cost = pl.CostEstimate(flops=seq_len * cols, transcendentals=0,
                           bytes_accessed=total_bytes)

    kernel = functools.partial(_pe_add_kernel, batch=batch)

    out = pl.pallas_call(
        kernel,
        out_shape=jax.ShapeDtypeStruct((seq_len, cols), x.dtype),
        grid_spec=pltpu.PrefetchScalarGridSpec(
            num_scalar_prefetch=0,
            grid=grid,
            in_specs=[
                pl.BlockSpec((ts, cols), lambda s: (s, 0)),      # x slab
                pl.BlockSpec((ts, d_model), lambda s: (s, 0)),   # pe row-block (2-D, no padding)
            ],
            out_specs=pl.BlockSpec((ts, cols), lambda s: (s, 0)),
        ),
        compiler_params=pltpu.CompilerParams(
            dimension_semantics=("parallel",),
            vmem_limit_bytes=vmem_limit,
        ),
        cost_estimate=cost,
        input_output_aliases=({0: 0} if donate_x else {}),
    )(x2, pe)

    return out.reshape(seq_len, batch, d_model)


if __name__ == "__main__":
    # Small shapes consistent with the module's forward: (seq, batch, d_model)
    seq_len, batch, d_model = 8, 2, 32
    max_len = 64

    key = jax.random.PRNGKey(0)
    x = jax.random.normal(key, (seq_len, batch, d_model), dtype=jnp.float32)

    pe = make_positional_encoding(d_model, max_len, dtype=jnp.float32)

    y = positional_encoding_forward(x, pe)
    y = jax.block_until_ready(y)

    # Reference check (pure JAX) mirroring: x + pe[:seq_len, :]
    y_ref = x + pe[:seq_len]
    assert jnp.allclose(y, y_ref, atol=1e-6, rtol=1e-6), "mismatch vs reference"

    print("KERNEL_OK")
</pallas_src>

<mosaic_0001>
module attributes {stable_mosaic.version = 11 : i64} {
  func.func @_pe_add_kernel(%arg0: i32, %arg1: memref<8x64xf32, #tpu.memory_space<vmem>>, %arg2: memref<8x32xf32, #tpu.memory_space<vmem>>, %arg3: memref<8x64xf32, #tpu.memory_space<vmem>>) attributes {dimension_semantics = [#tpu.dimension_semantics<parallel>], iteration_bounds = array<i64: 1>, scalar_prefetch = 0 : i64, scratch_operands = 0 : i64, tpu.core_type = #tpu.core_type<tc>, window_params = [{transform_indices = @transform_0, window_bounds = array<i64: 8, 64>}, {transform_indices = @transform_1, window_bounds = array<i64: 8, 32>}, {transform_indices = @transform_2, window_bounds = array<i64: 8, 64>}]} {
    %c0 = arith.constant 0 : index
    %c0_0 = arith.constant 0 : index
    %0 = vector.load %arg2[%c0, %c0_0] : memref<8x32xf32, #tpu.memory_space<vmem>>, vector<8x32xf32>
    %1 = tpu.concatenate %0, %0 in 1 : vector<8x32xf32>, vector<8x32xf32> -> vector<8x64xf32>
    %c0_1 = arith.constant 0 : index
    %c0_2 = arith.constant 0 : index
    %2 = vector.load %arg1[%c0_1, %c0_2] : memref<8x64xf32, #tpu.memory_space<vmem>>, vector<8x64xf32>
    %3 = arith.addf %2, %1 : vector<8x64xf32>
    %c0_3 = arith.constant 0 : index
    %c0_4 = arith.constant 0 : index
    %4 = vector.load %arg3[%c0_3, %c0_4] : memref<8x64xf32, #tpu.memory_space<vmem>>, vector<8x64xf32>
    tpu.vector_store %arg3[%c0_3, %c0_4], %3 {strides = array<i32>} : memref<8x64xf32, #tpu.memory_space<vmem>>, vector<8x64xf32>,
    return
  }
  func.func @transform_0(%arg0: i32) -> (i32, i32) {
    %c0_i32 = arith.constant 0 : i32
    %c0_i32_0 = arith.constant 0 : i32
    return %arg0, %c0_i32 : i32, i32
  }
  func.func @transform_1(%arg0: i32) -> (i32, i32) {
    %c0_i32 = arith.constant 0 : i32
    %c0_i32_0 = arith.constant 0 : i32
    return %arg0, %c0_i32 : i32, i32
  }
  func.func @transform_2(%arg0: i32) -> (i32, i32) {
    %c0_i32 = arith.constant 0 : i32
    %c0_i32_0 = arith.constant 0 : i32
    return %arg0, %c0_i32 : i32, i32
  }
}

</mosaic_0001>

<llo_original>
// kernel: tpu_custom_call.1
$region0: #{tpu_custom_call.1}
  #allocation0 [shape = 'u32[]', space=smem, size = 0x4, offset = 0x4, fixed_abs, tag = 'smem constant byte address 0x4 - core index']
  #allocation1 [shape = 'u32[72,128]{1,0:T(1,128)}', space=vmem, size = 0x9000, scoped, tag = 'internal scratch']
  %s0 = inlined_call_operand.vmem [shape: f32[8,64], index: 0, kind: input, shape index: {}]
  %s1 = inlined_call_operand.vmem [shape: f32[64,32], index: 1, kind: input, shape index: {}]
  %s2 = inlined_call_operand.hbm [shape: f32[8,64], index: 2, kind: output, shape index: {}]
  %s3 = sld [smem:[#allocation0]]
  $region18: #{tpu_custom_call.1} parent=0
    _
  %s5 = ssub.s32 1, %s3
  %s6 = scalar_select 0, %s5, %s3
  $region1: #{tpu_custom_call.1} parent=0
    #allocation2 [shape = 'u8[4096]{0}', space=vmem, size = 0x1000, scoped, tag = 'output window, operand 0, single buffered']
    #allocation3 [shape = 's32[1]{0}', space=sflag, size = 0x4, scoped, tag = 'scoped memory for tpu_custom_call.1']
    %7 = vsyncpa [#allocation3], 0
    // Predicated region
    $region2: #{tpu_custom_call.1} parent=1 // pred_check
      _
    $region3: #{tpu_custom_call.1} parent=1 // pred_check_branch
      %9 = sbr.rel (0) target = $region5
    $region4: #{tpu_custom_call.1} parent=1 // pred_region
      _
    $region5: #{tpu_custom_call.1} parent=1 // pred_fallthru
      _
    // Predicated region
    $region6: #{tpu_custom_call.1} parent=1 // pred_check
      _
    $region7: #{tpu_custom_call.1} parent=1 // pred_check_branch
      %11 = sbr.rel (0) target = $region9
    $region8: #{tpu_custom_call.1} parent=1 // pred_region
      _
    $region9: #{tpu_custom_call.1} parent=1 // pred_fallthru
      _
    %v12 = vld [vmem:[%s1] sm:$0xff]
    %14 = vrot.lane.b32.xlu0 %v12, 32
    %v15 = vpop.permute.xlu0 %14
    %vm17 = vcmask 261120
    %v18 = vsel %vm17, %v12, %v15
    %v19 = vld [vmem:[%s0] sm:$0xff]
    %v20 = vadd.f32 %v19, %v18
    %vm21 = vcmask 523264
    %22 = vst.msk [vmem:[#allocation2] sm:$0xff] %vm21, %v20
    // Predicated region
    $region10: #{tpu_custom_call.1} parent=1 // pred_check
      _
    $region11: #{tpu_custom_call.1} parent=1 // pred_check_branch
      %24 = sbr.rel (0) target = $region13
    $region12: #{tpu_custom_call.1} parent=1 // pred_region
      %26 = vsyncadd [#allocation3], 0
      %s28 = sshll.u32 [#allocation2], 4
      %s29 = int_to_ptr.vmem [resolvable:$true] %s28
      %s30 = sshll.u32 %s2, 4
      %s31 = int_to_ptr.hbm [resolvable:$true] %s30
      %33 = dma.vmem_to_hbm [thread:$0]  %s29, 128, %s31, [#allocation3]
    $region13: #{tpu_custom_call.1} parent=1 // pred_fallthru
      _
    // Predicated region
    $region14: #{tpu_custom_call.1} parent=1 // pred_check
      _
    $region15: #{tpu_custom_call.1} parent=1 // pred_check_branch
      %35 = sbr.rel (0) target = $region17
    $region16: #{tpu_custom_call.1} parent=1 // pred_region
      %37 = dma.done [#allocation3], 128
    $region17: #{tpu_custom_call.1} parent=1 // pred_fallthru
      _
    %38 = vsyncpa [#allocation3], 1

</llo_original>
